<compile_context>
chip_gen: v5e
topology: v5e:2x2
jax: 0.10.0
libtpu: 0.0.40
codegen_flags: <defaults>
</compile_context>

<pallas_src>
import functools

import jax
import jax.numpy as jnp
from jax import lax
from jax.experimental import pallas as pl
from jax.experimental.pallas import tpu as pltpu

GAMMA = 1.5
ALPHA = 0.25
LANES = 128


def _focal_sum_kernel(pred_ref, true_ref, out_ref, *, gamma, alpha,
                      valid_rows_last, needs_mask):
    """One block of elementwise focal loss, folded to an (8, 128) f32 partial sum."""
    x = pred_ref[...].astype(jnp.float32)
    y = true_ref[...].astype(jnp.float32)

    # One shared exp(-|x|) feeds both the stable-BCE log1p term and the sigmoid.
    ax = jnp.abs(x)
    e = jnp.exp(-ax)                                     # EUP, in (0, 1]
    # max(x, 0) == 0.5 * (x + |x|): reuses ax, avoids a compare+select.
    bce = 0.5 * (x + ax) - x * y + jnp.log1p(e)

    # sigmoid(x): 1/(1+e) for x >= 0, e/(1+e) for x < 0.  approx=True is a
    # single EUP vrcp; precision cost is negligible for a reduced loss scalar.
    inv = pl.reciprocal(1.0 + e, approx=True)
    p = jnp.where(x >= 0.0, inv, e * inv)

    # Algebraic folds:
    #   d  = 1 - p_t           = p + y - 2*p*y
    #   af = alpha_factor      = (1 - alpha) + (2*alpha - 1)*y
    d = p + y - 2.0 * (p * y)
    af = (1.0 - alpha) + (2.0 * alpha - 1.0) * y
    if gamma == 1.5:
        mf = d * jnp.sqrt(d)            # d**1.5 without exp/log
    elif gamma == 2.0:
        mf = d * d
    elif gamma == 1.0:
        mf = d
    else:
        mf = d ** gamma
    loss = bce * af * mf

    def _fold(v):
        # (tile_r, 128) -> (8, 128): pure VPU adds (tile_r is a multiple of 8).
        return v.reshape(-1, 8, LANES).sum(axis=0)

    if needs_mask:
        last = pl.num_programs(0) - 1
        i = pl.program_id(0)

        @pl.when(i != last)
        def _():
            out_ref[...] = _fold(loss)

        @pl.when(i == last)
        def _():
            # Only the final (partial) boundary block pays for the mask: rows
            # past the end of the array hold undefined data and must be zeroed
            # with a select (robust even if the garbage is NaN/Inf).
            rid = lax.broadcasted_iota(jnp.int32, loss.shape, 0)
            out_ref[...] = _fold(jnp.where(rid < valid_rows_last, loss, 0.0))
    else:
        out_ref[...] = _fold(loss)


def _plain_focal_elementwise(x, y, gamma, alpha):
    """Tiny jnp fallback for the sub-tile tail of ragged inputs."""
    x = x.astype(jnp.float32)
    y = y.astype(jnp.float32)
    bce = jnp.maximum(x, 0.0) - x * y + jnp.log1p(jnp.exp(-jnp.abs(x)))
    p = jax.nn.sigmoid(x)
    d = p + y - 2.0 * p * y
    af = (1.0 - alpha) + (2.0 * alpha - 1.0) * y
    return bce * af * (d ** gamma)


def _target_block_bytes():
    """Per-input block size: 2 MiB on v5e (16 MiB scoped-VMEM default, ~820 GB/s
    HBM already amortized), 4 MiB on v6e/v7x (fast HBM -> amortize the ~0.35 us
    per-grid-step overhead).  2 inputs x 2 pipeline buffers stays well under the
    explicit 32 MiB vmem limit on every generation."""
    try:
        kind = jax.devices()[0].device_kind.lower()
    except Exception:
        kind = ""
    if "v5 lite" in kind or "v5e" in kind or "v5litepod" in kind:
        return 2 * 1024 * 1024
    return 4 * 1024 * 1024


def _focal_sum_pallas(pred2, true2, gamma, alpha, block_rows=None):
    """Sum of focal loss over a lane-dense (rows, 128) slab (rows % sublane == 0)."""
    rows = pred2.shape[0]
    isz_min = min(pred2.dtype.itemsize, true2.dtype.itemsize)
    isz_max = max(pred2.dtype.itemsize, true2.dtype.itemsize)
    sub = max(8, 32 // isz_min)          # min sublane tile: 8 f32 / 16 bf16 / 32 int8

    if block_rows is None:
        block_rows = _target_block_bytes() // (LANES * isz_max)
    block_rows = max(sub, (block_rows // sub) * sub)
    tile_r = min(block_rows, rows)                       # multiple of sub
    num_blocks = pl.cdiv(rows, tile_r)
    valid_rows_last = rows - (num_blocks - 1) * tile_r   # rows in the last block
    needs_mask = valid_rows_last != tile_r               # last block is partial

    kernel = functools.partial(
        _focal_sum_kernel, gamma=gamma, alpha=alpha,
        valid_rows_last=valid_rows_last, needs_mask=needs_mask)

    partials = pl.pallas_call(
        kernel,
        out_shape=jax.ShapeDtypeStruct((num_blocks * 8, LANES), jnp.float32),
        grid=(num_blocks,),
        in_specs=[pl.BlockSpec((tile_r, LANES), lambda i: (i, 0)),
                  pl.BlockSpec((tile_r, LANES), lambda i: (i, 0))],
        out_specs=pl.BlockSpec((8, LANES), lambda i: (i, 0)),
        compiler_params=pltpu.CompilerParams(
            # Independent per-block partial sums -> parallel axis; lets the
            # runtime shard blocks across both TensorCores on v7x.
            dimension_semantics=("parallel",),
            vmem_limit_bytes=32 * 1024 * 1024),
    )(pred2, true2)
    # Tiny (num_blocks*8, 128) f32 array; let XLA finish the reduction.
    return jnp.sum(partials)


def focal_loss(pred, true, gamma=GAMMA, alpha=ALPHA, reduction="mean", *,
               block_rows=None):
    """Focal loss reduced to a scalar ('mean' or 'sum'). pred/true: same shape."""
    assert pred.shape == true.shape
    # TODO(synk): reduction='none' (per-element loss tensor) is not supported by
    # this sum-reducing kernel; only 'mean'/'sum'.
    assert reduction in ("mean", "sum")

    n = pred.size
    p_flat = pred.reshape(-1)            # free bitcast of a contiguous array
    t_flat = true.reshape(-1)

    isz_min = min(jnp.dtype(pred.dtype).itemsize, jnp.dtype(true.dtype).itemsize)
    sub = max(8, 32 // isz_min)
    align = sub * LANES                  # kernel granularity (1024 f32 / 2048 bf16 elems)
    n_main = (n // align) * align
    n_tail = n - n_main

    total = jnp.zeros((), jnp.float32)
    if n_tail:
        # Sub-tile tail (< align elements): negligible plain-jnp work.
        # TODO(synk): when n_main > 0 the prefix slice below still materializes
        # one HBM copy of each input; a fully copy-free ragged path would need a
        # manual-DMA (memory_space=pl.ANY) kernel for the last partial block.
        total = total + jnp.sum(_plain_focal_elementwise(
            p_flat[n_main:], t_flat[n_main:], gamma, alpha))

    if n_main:
        rows = n_main // LANES
        if n_tail:
            p2 = p_flat[:n_main].reshape(rows, LANES)
            t2 = t_flat[:n_main].reshape(rows, LANES)
        else:
            p2 = p_flat.reshape(rows, LANES)   # zero-copy path (no wrapper HBM traffic)
            t2 = t_flat.reshape(rows, LANES)
        total = total + _focal_sum_pallas(p2, t2, gamma, alpha,
                                          block_rows=block_rows)

    if reduction == "mean":
        return total / jnp.float32(n)
    return total


def _reference(pred, true, gamma=GAMMA, alpha=ALPHA):
    x = pred.astype(jnp.float32)
    y = true.astype(jnp.float32)
    bce = jnp.maximum(x, 0.0) - x * y + jnp.log1p(jnp.exp(-jnp.abs(x)))
    p = jax.nn.sigmoid(x)
    p_t = y * p + (1.0 - y) * (1.0 - p)
    af = y * alpha + (1.0 - y) * (1.0 - alpha)
    mf = (1.0 - p_t) ** gamma
    return jnp.mean(bce * af * mf)


if __name__ == "__main__":
    key = jax.random.PRNGKey(0)
    ks = jax.random.split(key, 6)

    # Tolerance is loose only because of the approximate EUP reciprocal
    # (pl.reciprocal(..., approx=True)); with approx=False the kernel matches
    # the reference to ~1e-6.
    RTOL, ATOL = 1e-2, 1e-6

    def check(pred, true, **kw):
        out = jax.block_until_ready(focal_loss(pred, true, **kw))
        ref = jax.block_until_ready(_reference(pred, true))
        assert jnp.allclose(out, ref, rtol=RTOL, atol=ATOL), (out, ref)

    # 1) NCHW, lane-aligned (2*4*16*16 = 2048 elems): zero-copy single-block path.
    pred = jax.random.normal(ks[0], (2, 4, 16, 16), dtype=jnp.float32)
    true = jax.random.uniform(ks[1], (2, 4, 16, 16), dtype=jnp.float32)
    check(pred, true)

    # 2) bf16 inputs: native-dtype DMA + 16-row sublane tiling path.
    check(pred.astype(jnp.bfloat16), true.astype(jnp.bfloat16))

    # 3) Multi-block grid with a masked partial last block (small block override:
    #    24 rows of 128 lanes, 16-row blocks -> 2 blocks, last one half-valid).
    pred3 = jax.random.normal(ks[2], (2, 4, 12, 32), dtype=jnp.float32)
    true3 = jax.random.uniform(ks[3], (2, 4, 12, 32), dtype=jnp.float32)
    check(pred3, true3, block_rows=16)

    # 4) Ragged size (2160 elems): kernel prefix + plain-jnp tail.
    pred4 = jax.random.normal(ks[4], (3, 5, 9, 16), dtype=jnp.float32)
    true4 = jax.random.uniform(ks[5], (3, 5, 9, 16), dtype=jnp.float32)
    check(pred4, true4)

    # 5) 'sum' reduction.
    out_s = jax.block_until_ready(focal_loss(pred, true, reduction="sum"))
    ref_s = jax.block_until_ready(_reference(pred, true) * pred.size)
    assert jnp.allclose(out_s, ref_s, rtol=RTOL, atol=1e-3), (out_s, ref_s)

    print("KERNEL_OK")
</pallas_src>

<mosaic_0001>
module attributes {stable_mosaic.version = 11 : i64} {
  func.func @_focal_sum_kernel(%arg0: i32, %arg1: memref<16x128xf32, #tpu.memory_space<vmem>>, %arg2: memref<16x128xf32, #tpu.memory_space<vmem>>, %arg3: memref<8x128xf32, #tpu.memory_space<vmem>>) attributes {dimension_semantics = [#tpu.dimension_semantics<parallel>], iteration_bounds = array<i64: 1>, scalar_prefetch = 0 : i64, scratch_operands = 0 : i64, tpu.core_type = #tpu.core_type<tc>, window_params = [{transform_indices = @transform_0, window_bounds = array<i64: 16, 128>}, {transform_indices = @transform_1, window_bounds = array<i64: 16, 128>}, {transform_indices = @transform_2, window_bounds = array<i64: 8, 128>}]} {
    %c0 = arith.constant 0 : index
    %c0_0 = arith.constant 0 : index
    %0 = vector.load %arg1[%c0, %c0_0] : memref<16x128xf32, #tpu.memory_space<vmem>>, vector<16x128xf32>
    %c0_1 = arith.constant 0 : index
    %c0_2 = arith.constant 0 : index
    %1 = vector.load %arg2[%c0_1, %c0_2] : memref<16x128xf32, #tpu.memory_space<vmem>>, vector<16x128xf32>
    %2 = math.absf %0 : vector<16x128xf32>
    %cst = arith.constant 0.000000e+00 : f32
    %3 = vector.broadcast %cst : f32 to vector<16x128xf32>
    %4 = arith.subf %3, %2 : vector<16x128xf32>
    %5 = math.exp %4 : vector<16x128xf32>
    %6 = arith.addf %0, %2 : vector<16x128xf32>
    %cst_3 = arith.constant 5.000000e-01 : f32
    %7 = vector.broadcast %cst_3 : f32 to vector<16x128xf32>
    %8 = arith.mulf %7, %6 : vector<16x128xf32>
    %9 = arith.mulf %0, %1 : vector<16x128xf32>
    %10 = arith.subf %8, %9 : vector<16x128xf32>
    %11 = math.log1p %5 : vector<16x128xf32>
    %12 = arith.addf %10, %11 : vector<16x128xf32>
    %cst_4 = arith.constant 1.000000e+00 : f32
    %13 = vector.broadcast %cst_4 : f32 to vector<16x128xf32>
    %14 = arith.addf %13, %5 : vector<16x128xf32>
    %15 = tpu.reciprocal %14 {approx = true} : vector<16x128xf32> -> vector<16x128xf32>
    %cst_5 = arith.constant 0.000000e+00 : f32
    %16 = vector.broadcast %cst_5 : f32 to vector<16x128xf32>
    %17 = arith.cmpf oge, %0, %16 : vector<16x128xf32>
    %18 = arith.mulf %5, %15 : vector<16x128xf32>
    %19 = arith.select %17, %15, %18 : vector<16x128xi1>, vector<16x128xf32>
    %20 = arith.addf %19, %1 : vector<16x128xf32>
    %21 = arith.mulf %19, %1 : vector<16x128xf32>
    %cst_6 = arith.constant 2.000000e+00 : f32
    %22 = vector.broadcast %cst_6 : f32 to vector<16x128xf32>
    %23 = arith.mulf %22, %21 : vector<16x128xf32>
    %24 = arith.subf %20, %23 : vector<16x128xf32>
    %cst_7 = arith.constant -5.000000e-01 : f32
    %25 = vector.broadcast %cst_7 : f32 to vector<16x128xf32>
    %26 = arith.mulf %25, %1 : vector<16x128xf32>
    %cst_8 = arith.constant 7.500000e-01 : f32
    %27 = vector.broadcast %cst_8 : f32 to vector<16x128xf32>
    %28 = arith.addf %27, %26 : vector<16x128xf32>
    %29 = math.sqrt %24 : vector<16x128xf32>
    %30 = arith.mulf %24, %29 : vector<16x128xf32>
    %31 = arith.mulf %12, %28 : vector<16x128xf32>
    %32 = arith.mulf %31, %30 : vector<16x128xf32>
    %33 = vector.shape_cast %32 : vector<16x128xf32> to vector<2x8x128xf32>
    %cst_9 = arith.constant dense<0.000000e+00> : vector<8x128xf32>
    %34 = vector.multi_reduction <add>, %33, %cst_9 [0] : vector<2x8x128xf32> to vector<8x128xf32>
    %c0_10 = arith.constant 0 : index
    %c0_11 = arith.constant 0 : index
    %35 = vector.load %arg3[%c0_10, %c0_11] : memref<8x128xf32, #tpu.memory_space<vmem>>, vector<8x128xf32>
    tpu.vector_store %arg3[%c0_10, %c0_11], %34 {strides = array<i32>} : memref<8x128xf32, #tpu.memory_space<vmem>>, vector<8x128xf32>,
    return
  }
  func.func @transform_0(%arg0: i32) -> (i32, i32) {
    %c0_i32 = arith.constant 0 : i32
    %c0_i32_0 = arith.constant 0 : i32
    return %arg0, %c0_i32 : i32, i32
  }
  func.func @transform_1(%arg0: i32) -> (i32, i32) {
    %c0_i32 = arith.constant 0 : i32
    %c0_i32_0 = arith.constant 0 : i32
    return %arg0, %c0_i32 : i32, i32
  }
  func.func @transform_2(%arg0: i32) -> (i32, i32) {
    %c0_i32 = arith.constant 0 : i32
    %c0_i32_0 = arith.constant 0 : i32
    return %arg0, %c0_i32 : i32, i32
  }
}

</mosaic_0001>

<llo_original>
// kernel: tpu_custom_call.1
$region0: #{tpu_custom_call.1}
  #allocation0 [shape = 'u32[]', space=smem, size = 0x4, offset = 0x4, fixed_abs, tag = 'smem constant byte address 0x4 - core index']
  #allocation1 [shape = 'u32[72,128]{1,0:T(1,128)}', space=vmem, size = 0x9000, scoped, tag = 'internal scratch']
  %s0 = inlined_call_operand.hbm [shape: f32[16,128], index: 0, kind: input, shape index: {}]
  %s1 = inlined_call_operand.hbm [shape: f32[16,128], index: 1, kind: input, shape index: {}]
  %s2 = inlined_call_operand.hbm [shape: f32[8,128], index: 2, kind: output, shape index: {}]
  %s3 = sld [smem:[#allocation0]]
  $region26: #{tpu_custom_call.1} parent=0
    _
  %s5 = ssub.s32 1, %s3
  %s6 = scalar_select 0, %s5, %s3
  $region1: #{tpu_custom_call.1} parent=0
    #allocation2 [shape = 'u8[8192]{0}', space=vmem, size = 0x2000, scoped, tag = 'input window, operand 0, single buffered']
    #allocation3 [shape = 's32[1]{0}', space=sflag, size = 0x4, scoped, tag = 'scoped memory for tpu_custom_call.1']
    #allocation4 [shape = 's32[1]{0}', space=sflag, size = 0x4, scoped, tag = 'scoped memory for tpu_custom_call.1']
    #allocation5 [shape = 'u8[8192]{0}', space=vmem, size = 0x2000, scoped, tag = 'input window, operand 1, single buffered']
    #allocation6 [shape = 's32[1]{0}', space=sflag, size = 0x4, scoped, tag = 'scoped memory for tpu_custom_call.1']
    #allocation7 [shape = 'u8[4096]{0}', space=vmem, size = 0x1000, scoped, tag = 'output window, operand 0, single buffered']
    %7 = vsyncpa [#allocation3], 0
    %8 = vsyncpa [#allocation6], 0
    %9 = vsyncpa [#allocation4], 0
    // Predicated region
    $region2: #{tpu_custom_call.1} parent=1 // pred_check
      _
    $region3: #{tpu_custom_call.1} parent=1 // pred_check_branch
      %11 = sbr.rel (0) target = $region5
    $region4: #{tpu_custom_call.1} parent=1 // pred_region
      %13 = vsyncadd [#allocation3], 0
      %s14 = sshll.u32 %s0, 4
      %s15 = int_to_ptr.hbm [resolvable:$true] %s14
      %s16 = sshll.u32 [#allocation2], 4
      %s17 = int_to_ptr.vmem [resolvable:$true] %s16
      %22 = dma.hbm_to_vmem [thread:$0]  %s15, 256, %s17, [#allocation3], 128, 128, 8
    $region5: #{tpu_custom_call.1} parent=1 // pred_fallthru
      _
    // Predicated region
    $region6: #{tpu_custom_call.1} parent=1 // pred_check
      _
    $region7: #{tpu_custom_call.1} parent=1 // pred_check_branch
      %24 = sbr.rel (0) target = $region9
    $region8: #{tpu_custom_call.1} parent=1 // pred_region
      %26 = vsyncadd [#allocation6], 0
      %s27 = sshll.u32 %s1, 4
      %s28 = int_to_ptr.hbm [resolvable:$true] %s27
      %s29 = sshll.u32 [#allocation5], 4
      %s30 = int_to_ptr.vmem [resolvable:$true] %s29
      %35 = dma.hbm_to_vmem [thread:$0]  %s28, 256, %s30, [#allocation6], 128, 128, 8
    $region9: #{tpu_custom_call.1} parent=1 // pred_fallthru
      _
    // Predicated region
    $region10: #{tpu_custom_call.1} parent=1 // pred_check
      _
    $region11: #{tpu_custom_call.1} parent=1 // pred_check_branch
      %37 = sbr.rel (0) target = $region13
    $region12: #{tpu_custom_call.1} parent=1 // pred_region
      %39 = dma.done [#allocation3], 256
    $region13: #{tpu_custom_call.1} parent=1 // pred_fallthru
      _
    // Predicated region
    $region14: #{tpu_custom_call.1} parent=1 // pred_check
      _
    $region15: #{tpu_custom_call.1} parent=1 // pred_check_branch
      %41 = sbr.rel (0) target = $region17
    $region16: #{tpu_custom_call.1} parent=1 // pred_region
      %43 = dma.done [#allocation6], 256
    $region17: #{tpu_custom_call.1} parent=1 // pred_fallthru
      _
    %v44 = vld [vmem:[#allocation2] sm:$0xff]
    %v45 = vld [vmem:[#allocation2 + $0x8] sm:$0xff]
    %v46 = vld [vmem:[#allocation5] sm:$0xff]
    %v47 = vld [vmem:[#allocation5 + $0x8] sm:$0xff]
    %v48 = vand.u32 2147483647, %v44
    %v49 = vand.u32 2147483647, %v45
    %v50 = vsub.f32 0.0, %v48
    %v51 = vsub.f32 0.0, %v49
    %v52 = vmul.f32 %v50, 1.442695
    %v53 = vpow.pop %v52
    %v54 = vmul.f32 %v51, 1.442695
    %v55 = vpow.pop %v54
    %v56 = vadd.f32 %v44, %v48
    %v57 = vadd.f32 %v45, %v49
    %v58 = vmul.f32 %v56, 0.5
    %v59 = vmul.f32 %v57, 0.5
    %v60 = vmul.f32 %v44, %v46
    %v61 = vmul.f32 %v45, %v47
    %v62 = vsub.f32 %v58, %v60
    %v63 = vsub.f32 %v59, %v61
    %v64 = vadd.f32 %v53, 1.0
    %v65 = vlog2.pop %v64
    %v66 = vmul.f32 %v65, 0.6931472
    %v67 = vmul.f32 -0.5, %v53
    %v68 = vadd.f32 %v67, 1.0
    %v69 = vmul.f32 %v68, %v53
    %v70 = vand.u32 2147483647, %v53
    %vm71 = vcmp.lt.f32.partialorder %v70, 0.0004427343
    %v72 = vsel %vm71, %v69, %v66
    %v73 = vadd.f32 %v55, 1.0
    %v74 = vlog2.pop %v73
    %v75 = vmul.f32 %v74, 0.6931472
    %v76 = vmul.f32 -0.5, %v55
    %v77 = vadd.f32 %v76, 1.0
    %v78 = vmul.f32 %v77, %v55
    %v79 = vand.u32 2147483647, %v55
    %vm80 = vcmp.lt.f32.partialorder %v79, 0.0004427343
    %v81 = vsel %vm80, %v78, %v75
    %v82 = vadd.f32 %v62, %v72
    %v83 = vadd.f32 %v63, %v81
    %v84 = vadd.f32 %v53, 1.0
    %v85 = vadd.f32 %v55, 1.0
    %v86 = vrcp.pop %v84
    %v87 = vrcp.pop %v85
    %vm88 = vcmp.ge.f32.partialorder %v44, 0.0
    %vm89 = vcmp.ge.f32.partialorder %v45, 0.0
    %v90 = vmul.f32 %v53, %v86
    %v91 = vmul.f32 %v55, %v87
    %v92 = vsel %vm88, %v86, %v90
    %v93 = vsel %vm89, %v87, %v91
    %v94 = vadd.f32 %v92, %v46
    %v95 = vadd.f32 %v93, %v47
    %v96 = vmul.f32 %v92, %v46
    %v97 = vmul.f32 %v93, %v47
    %v98 = vmul.f32 %v96, 2.0
    %v99 = vmul.f32 %v97, 2.0
    %v100 = vsub.f32 %v94, %v98
    %v101 = vsub.f32 %v95, %v99
    %v102 = vmul.f32 %v46, -0.5
    %v103 = vmul.f32 %v47, -0.5
    %v104 = vadd.f32 %v102, 0.75
    %v105 = vadd.f32 %v103, 0.75
    %v106 = vrsqrt.pop %v100
    %v107 = vmul.f32 %v106, %v100
    %v108 = vmul.f32 %v107, %v106
    %v109 = vmul.f32 0.5, %v108
    %v110 = vsub.f32 1.5, %v109
    %v111 = vmul.f32 %v106, %v110
    %v112 = vmul.f32 %v100, %v111
    %vm113 = vcmp.eq.f32.partialorder %v100, inf
    %v114 = vsel %vm113, %v100, %v112
    %vm115 = vcmp.eq.f32.partialorder %v100, 0.0
    %v116 = vand.u32 %v100, 2147483648
    %v117 = vsel %vm115, %v116, %v114
    %v118 = vrsqrt.pop %v101
    %v119 = vmul.f32 %v118, %v101
    %v120 = vmul.f32 %v119, %v118
    %v121 = vmul.f32 0.5, %v120
    %v122 = vsub.f32 1.5, %v121
    %v123 = vmul.f32 %v118, %v122
    %v124 = vmul.f32 %v101, %v123
    %vm125 = vcmp.eq.f32.partialorder %v101, inf
    %v126 = vsel %vm125, %v101, %v124
    %vm127 = vcmp.eq.f32.partialorder %v101, 0.0
    %v128 = vand.u32 %v101, 2147483648
    %v129 = vsel %vm127, %v128, %v126
    %v130 = vmul.f32 %v100, %v117
    %v131 = vmul.f32 %v101, %v129
    %v132 = vmul.f32 %v82, %v104
    %v133 = vmul.f32 %v83, %v105
    %v134 = vmul.f32 %v132, %v130
    %v135 = vmul.f32 %v133, %v131
    %v136 = vadd.f32 %v134, %v135
    %137 = vst [vmem:[#allocation7] sm:$0xff] %v136
    // Predicated region
    $region18: #{tpu_custom_call.1} parent=1 // pred_check
      _
    $region19: #{tpu_custom_call.1} parent=1 // pred_check_branch
      %139 = sbr.rel (0) target = $region21
    $region20: #{tpu_custom_call.1} parent=1 // pred_region
      %141 = vsyncadd [#allocation4], 0
      %s143 = sshll.u32 [#allocation7], 4
      %s144 = int_to_ptr.vmem [resolvable:$true] %s143
      %s145 = sshll.u32 %s2, 4
      %s146 = int_to_ptr.hbm [resolvable:$true] %s145
      %148 = dma.vmem_to_hbm [thread:$0]  %s144, 128, %s146, [#allocation4]
    $region21: #{tpu_custom_call.1} parent=1 // pred_fallthru
      _
    // Predicated region
    $region22: #{tpu_custom_call.1} parent=1 // pred_check
      _
    $region23: #{tpu_custom_call.1} parent=1 // pred_check_branch
      %150 = sbr.rel (0) target = $region25
    $region24: #{tpu_custom_call.1} parent=1 // pred_region
      %152 = dma.done [#allocation4], 128
    $region25: #{tpu_custom_call.1} parent=1 // pred_fallthru
      _
    %153 = vsyncpa [#allocation3], 1
    %154 = vsyncpa [#allocation6], 1
    %155 = vsyncpa [#allocation4], 1

</llo_original>
